<compile_context>
chip_gen: v7x
topology: tpu7x:2x2x1
jax: 0.10.0
libtpu: 0.0.40
codegen_flags: <defaults>
</compile_context>

<pallas_src>
import math

import jax
import jax.numpy as jnp
from jax.experimental import pallas as pl
from jax.experimental.pallas import tpu as pltpu


# --------------------------------------------------------------------------- #
# Helpers
# --------------------------------------------------------------------------- #
def _round_up(n, m):
    return ((n + m - 1) // m) * m


def _vmem_caps():
    """(physical VMEM bytes, working-set budget bytes), generation-aware."""
    phys = 64 << 20  # conservative (v7x-class) if the query is unavailable
    try:
        info = pltpu.get_tpu_info()
        phys = int(getattr(info, "vmem_capacity_bytes", phys) or phys)
    except Exception:
        pass
    return phys, (phys * 3) // 4


def _working_set_bytes(block_b, in_f, out_f, x_bytes):
    """VMEM working set for one grid step (weights/biases single-buffered)."""
    x_tile = 2 * block_b * in_f * x_bytes          # activation tile (double-buffered)
    eps_tile = 2 * block_b * out_f * 4             # noise tile (double-buffered, f32)
    w_tile = in_f * (2 * out_f) * x_bytes          # packed [W_mu | W_lv] (single-buffered)
    b_tile = (2 * out_f) * 4                       # packed biases (single-buffered)
    o_tile = 2 * block_b * (3 * out_f) * 4         # packed output slab (double-buffered)
    return x_tile + eps_tile + w_tile + b_tile + o_tile


def _grid_invariant_spec(shape):
    """BlockSpec for an operand whose index_map is constant: single-buffer it."""
    index_map = lambda i: tuple(0 for _ in shape)
    buffered = getattr(pl, "Buffered", None)
    if buffered is not None:
        try:
            return pl.BlockSpec(shape, index_map, pipeline_mode=buffered(1))
        except TypeError:  # older jax without pipeline_mode kwarg
            pass
    return pl.BlockSpec(shape, index_map)


# --------------------------------------------------------------------------- #
# Kernel
# --------------------------------------------------------------------------- #
def _make_gaussian_kernel(out_f, use_xlu_roll):
    two_f = 2 * out_f

    def kernel(x_ref, w_ref, b_ref, eps_ref, out_ref):
        # One lane-dense MXU matmul against packed [W_mu | W_lv]; f32 accumulate.
        mulv = jnp.dot(x_ref[...], w_ref[...],
                       preferred_element_type=jnp.float32) + b_ref[...]

        # Store [mu | log_var] straight into the packed output slab: one
        # lane-aligned store, no concatenate temp.
        out_ref[:, :two_f] = mulv.astype(out_ref.dtype)

        mu = mulv[:, :out_f]
        if use_xlu_roll:
            # Align log_var under mu via the XLU (free slot) so both operands of
            # z are leading slices (no lane-offset extraction on the VPU path).
            lv = pltpu.roll(mulv, shift=out_f, axis=-1)[:, :out_f]
        else:
            # Interpret/CPU-safe fallback (pltpu.roll has no CPU lowering).
            lv = mulv[:, out_f:]

        z = mu + jnp.exp(lv * 0.5) * eps_ref[...]   # EUP exp + VPU elementwise
        out_ref[:, two_f:] = z.astype(out_ref.dtype)

    return kernel


# --------------------------------------------------------------------------- #
# Wrapper
# --------------------------------------------------------------------------- #
def pack_gaussian_params(w_mu, b_mu, w_lv, b_lv, dtype=None):
    """Pack the two Linear layers once (hoisted out of the per-call path)."""
    w_packed = jnp.concatenate([w_mu, w_lv], axis=1)                 # (in_f, 2*out_f)
    b_packed = jnp.concatenate([b_mu.reshape(1, -1),
                                b_lv.reshape(1, -1)], axis=1).astype(jnp.float32)
    if dtype is not None:
        w_packed = w_packed.astype(dtype)
    return w_packed, b_packed


def gaussian_sampling(x, w_packed, b_packed, eps, *, block_b=None):
    """x: (B, in_f); w_packed: (in_f, 2*out_f); b_packed: (1, 2*out_f);
    eps: (B, out_f) standard-normal noise (== torch.randn in the reference).

    Returns (z, mu, log_var), each (B, out_f) float32.
    """
    B, in_f = x.shape
    two_f = w_packed.shape[1]
    out_f = two_f // 2
    three_f = 3 * out_f
    assert eps.shape == (B, out_f), "eps must be (B, out_features)"

    # Matmul operands keep x's dtype (no wrapper-side cast of the activation);
    # only the small weight operand is cast if it doesn't already match.
    w_op = w_packed if w_packed.dtype == x.dtype else w_packed.astype(x.dtype)
    b_op = b_packed.astype(jnp.float32)
    eps_op = eps.astype(jnp.float32)
    x_bytes = jnp.dtype(x.dtype).itemsize

    # --- batch tiling: biggest tile that fits the generation-aware budget ----
    phys_vmem, vmem_budget = _vmem_caps()
    if block_b is None:
        block_b = min(_round_up(B, 8), 8192)
        while (block_b > 8 and
               _working_set_bytes(block_b, in_f, out_f, x_bytes) > vmem_budget):
            block_b = max(8, _round_up(block_b // 2, 8))
    else:
        block_b = max(8, _round_up(block_b, 8))
    ws_bytes = _working_set_bytes(block_b, in_f, out_f, x_bytes)

    # Ragged batches: no jnp.pad of x (would add a full HBM read+write of the
    # activation).  Pallas masks the boundary block of a cdiv-sized grid.
    grid = (pl.cdiv(B, block_b),)

    vmem_limit = int(min(max(32 << 20, ws_bytes + (8 << 20)),
                         phys_vmem - (8 << 20)))

    x_spec = pl.BlockSpec((block_b, in_f), lambda i: (i, 0))
    eps_spec = pl.BlockSpec((block_b, out_f), lambda i: (i, 0))
    w_spec = _grid_invariant_spec((in_f, two_f))
    b_spec = _grid_invariant_spec((1, two_f))
    out_spec = pl.BlockSpec((block_b, three_f), lambda i: (i, 0))

    use_xlu_roll = jax.default_backend() == "tpu"
    kernel = _make_gaussian_kernel(out_f, use_xlu_roll)

    packed_out = pl.pallas_call(
        kernel,
        out_shape=jax.ShapeDtypeStruct((B, three_f), jnp.float32),
        grid=grid,
        in_specs=[x_spec, w_spec, b_spec, eps_spec],
        out_specs=out_spec,
        compiler_params=pltpu.CompilerParams(
            dimension_semantics=("parallel",),   # shards batch tiles across TCs
            vmem_limit_bytes=vmem_limit,
        ),
    )(x, w_op, b_op, eps_op)

    mu = packed_out[:, :out_f]
    log_var = packed_out[:, out_f:two_f]
    z = packed_out[:, two_f:]
    return z, mu, log_var


def init_params(key, in_features, out_features):
    """Deterministic init mimicking nn.Linear (uniform in +/- 1/sqrt(fan_in))."""
    k1, k2, k3, k4 = jax.random.split(key, 4)
    bound = 1.0 / math.sqrt(in_features)
    # Stored as (in_features, out_features) == transpose of PyTorch's (out, in).
    w_mu = jax.random.uniform(k1, (in_features, out_features), jnp.float32, -bound, bound)
    b_mu = jax.random.uniform(k2, (1, out_features), jnp.float32, -bound, bound)
    w_lv = jax.random.uniform(k3, (in_features, out_features), jnp.float32, -bound, bound)
    b_lv = jax.random.uniform(k4, (1, out_features), jnp.float32, -bound, bound)
    return w_mu, b_mu, w_lv, b_lv


# --------------------------------------------------------------------------- #
# Demo / self-check
# --------------------------------------------------------------------------- #
if __name__ == "__main__":
    B, in_features, out_features = 16, 32, 64

    key = jax.random.PRNGKey(0)
    kx, kp, ke = jax.random.split(key, 3)

    x = jax.random.normal(kx, (B, in_features), jnp.float32)
    w_mu, b_mu, w_lv, b_lv = init_params(kp, in_features, out_features)
    w_packed, b_packed = pack_gaussian_params(w_mu, b_mu, w_lv, b_lv)

    # TODO(synk): torch.randn is drawn host-side with jax.random (reproducible,
    # interpret-safe) instead of the in-kernel TPU hardware PRNG.
    eps = jax.random.normal(ke, (B, out_features), jnp.float32)

    z, mu, log_var = gaussian_sampling(x, w_packed, b_packed, eps)
    jax.block_until_ready((z, mu, log_var))

    mu_ref = x @ w_mu + b_mu
    lv_ref = x @ w_lv + b_lv
    z_ref = mu_ref + jnp.exp(lv_ref * 0.5) * eps
    assert jnp.allclose(mu, mu_ref, atol=1e-5, rtol=1e-5)
    assert jnp.allclose(log_var, lv_ref, atol=1e-5, rtol=1e-5)
    assert jnp.allclose(z, z_ref, atol=1e-5, rtol=1e-5)

    # Ragged batch + multi-tile path: grid = cdiv(B, block_b), no jnp.pad.
    B2 = 20
    x2 = jax.random.normal(kx, (B2, in_features), jnp.float32)
    eps2 = jax.random.normal(ke, (B2, out_features), jnp.float32)
    z2, mu2, lv2 = gaussian_sampling(x2, w_packed, b_packed, eps2, block_b=8)
    jax.block_until_ready((z2, mu2, lv2))

    mu2_ref = x2 @ w_mu + b_mu
    lv2_ref = x2 @ w_lv + b_lv
    z2_ref = mu2_ref + jnp.exp(lv2_ref * 0.5) * eps2
    assert jnp.allclose(mu2, mu2_ref, atol=1e-5, rtol=1e-5)
    assert jnp.allclose(lv2, lv2_ref, atol=1e-5, rtol=1e-5)
    assert jnp.allclose(z2, z2_ref, atol=1e-5, rtol=1e-5)

    print("KERNEL_OK")
</pallas_src>

<mosaic_0001>
module attributes {stable_mosaic.version = 11 : i64} {
  func.func @kernel(%arg0: i32, %arg1: memref<16x32xf32, #tpu.memory_space<vmem>>, %arg2: memref<32x128xf32, #tpu.memory_space<vmem>>, %arg3: memref<1x128xf32, #tpu.memory_space<vmem>>, %arg4: memref<16x64xf32, #tpu.memory_space<vmem>>, %arg5: memref<16x192xf32, #tpu.memory_space<vmem>>) attributes {dimension_semantics = [#tpu.dimension_semantics<parallel>], iteration_bounds = array<i64: 1>, scalar_prefetch = 0 : i64, scratch_operands = 0 : i64, tpu.core_type = #tpu.core_type<tc>, window_params = [{transform_indices = @transform_0, window_bounds = array<i64: 16, 32>}, {pipeline_mode = #tpu.pipeline_mode<synchronous>, transform_indices = @transform_1, window_bounds = array<i64: 32, 128>}, {pipeline_mode = #tpu.pipeline_mode<synchronous>, transform_indices = @transform_2, window_bounds = array<i64: 1, 128>}, {transform_indices = @transform_3, window_bounds = array<i64: 16, 64>}, {transform_indices = @transform_4, window_bounds = array<i64: 16, 192>}]} {
    %c0 = arith.constant 0 : index
    %c0_0 = arith.constant 0 : index
    %0 = vector.load %arg1[%c0, %c0_0] : memref<16x32xf32, #tpu.memory_space<vmem>>, vector<16x32xf32>
    %c0_1 = arith.constant 0 : index
    %c0_2 = arith.constant 0 : index
    %1 = vector.load %arg2[%c0_1, %c0_2] : memref<32x128xf32, #tpu.memory_space<vmem>>, vector<32x128xf32>
    %cst = arith.constant dense<0.000000e+00> : vector<16x128xf32>
    %2 = tpu.matmul %0, %1, %cst {dimension_numbers = #tpu.dot_dimension_numbers<[1], [0], [0], [1], [0, 0, 1, 1], [], []>} : vector<16x32xf32>, vector<32x128xf32>, vector<16x128xf32> -> vector<16x128xf32>
    %c0_3 = arith.constant 0 : index
    %c0_4 = arith.constant 0 : index
    %3 = vector.load %arg3[%c0_3, %c0_4] : memref<1x128xf32, #tpu.memory_space<vmem>>, vector<1x128xf32>
    %4 = vector.broadcast %3 : vector<1x128xf32> to vector<16x128xf32>
    %5 = arith.addf %2, %4 : vector<16x128xf32>
    %c0_5 = arith.constant 0 : index
    %c0_6 = arith.constant 0 : index
    %6 = vector.load %arg5[%c0_5, %c0_6] : memref<16x192xf32, #tpu.memory_space<vmem>>, vector<16x128xf32>
    tpu.vector_store %arg5[%c0_5, %c0_6], %5 {strides = array<i32>} : memref<16x192xf32, #tpu.memory_space<vmem>>, vector<16x128xf32>,
    %7 = vector.extract_strided_slice %5 {offsets = [0, 0], sizes = [16, 64], strides = [1, 1]} : vector<16x128xf32> to vector<16x64xf32>
    %8 = vector.extract_strided_slice %5 {offsets = [0, 64], sizes = [16, 64], strides = [1, 1]} : vector<16x128xf32> to vector<16x64xf32>
    %cst_7 = arith.constant 5.000000e-01 : f32
    %9 = vector.broadcast %cst_7 : f32 to vector<16x64xf32>
    %10 = arith.mulf %8, %9 : vector<16x64xf32>
    %11 = math.exp %10 : vector<16x64xf32>
    %c0_8 = arith.constant 0 : index
    %c0_9 = arith.constant 0 : index
    %12 = vector.load %arg4[%c0_8, %c0_9] : memref<16x64xf32, #tpu.memory_space<vmem>>, vector<16x64xf32>
    %13 = arith.mulf %11, %12 : vector<16x64xf32>
    %14 = arith.addf %7, %13 : vector<16x64xf32>
    %c0_10 = arith.constant 0 : index
    %c128 = arith.constant 128 : index
    %15 = vector.load %arg5[%c0_10, %c128] : memref<16x192xf32, #tpu.memory_space<vmem>>, vector<16x64xf32>
    tpu.vector_store %arg5[%c0_10, %c128], %14 {strides = array<i32>} : memref<16x192xf32, #tpu.memory_space<vmem>>, vector<16x64xf32>,
    return
  }
  func.func @transform_0(%arg0: i32) -> (i32, i32) {
    %c0_i32 = arith.constant 0 : i32
    %c0_i32_0 = arith.constant 0 : i32
    return %arg0, %c0_i32 : i32, i32
  }
  func.func @transform_1(%arg0: i32) -> (i32, i32) {
    %c0_i32 = arith.constant 0 : i32
    %c0_i32_0 = arith.constant 0 : i32
    %c0_i32_1 = arith.constant 0 : i32
    return %c0_i32, %c0_i32_0 : i32, i32
  }
  func.func @transform_2(%arg0: i32) -> (i32, i32) {
    %c0_i32 = arith.constant 0 : i32
    %c0_i32_0 = arith.constant 0 : i32
    %c0_i32_1 = arith.constant 0 : i32
    return %c0_i32, %c0_i32_0 : i32, i32
  }
  func.func @transform_3(%arg0: i32) -> (i32, i32) {
    %c0_i32 = arith.constant 0 : i32
    %c0_i32_0 = arith.constant 0 : i32
    return %arg0, %c0_i32 : i32, i32
  }
  func.func @transform_4(%arg0: i32) -> (i32, i32) {
    %c0_i32 = arith.constant 0 : i32
    %c0_i32_0 = arith.constant 0 : i32
    return %arg0, %c0_i32 : i32, i32
  }
}

</mosaic_0001>

<llo_original>
// kernel: tpu_custom_call.1
$region0: #{tpu_custom_call.1}
  #allocation0 [shape = 'u32[]', space=smem, size = 0x4, offset = 0x4, fixed_abs, tag = 'smem constant byte address 0x4 - core index']
  #allocation1 [shape = 'u32[144,128]{1,0:T(1,128)}', space=vmem, size = 0x12000, scoped, tag = 'internal scratch']
  %s0 = inlined_call_operand.hbm [shape: f32[16,32], index: 0, kind: input, shape index: {}]
  %s1 = inlined_call_operand.hbm [shape: f32[32,128], index: 1, kind: input, shape index: {}]
  %s2 = inlined_call_operand.vmem [shape: f32[1,128], index: 2, kind: input, shape index: {}]
  %s3 = inlined_call_operand.hbm [shape: f32[16,64], index: 3, kind: input, shape index: {}]
  %s4 = inlined_call_operand.hbm [shape: f32[16,192], index: 4, kind: output, shape index: {}]
  %s5 = sld [smem:[#allocation0]]
  $region38: #{tpu_custom_call.1} parent=0
    _
  %s7 = ssub.s32 1, %s5
  %s8 = scalar_select 0, %s7, %s5
  $region1: #{tpu_custom_call.1} parent=0
    #allocation2 [shape = 'u8[8192]{0}', space=vmem, size = 0x2000, scoped, tag = 'input window, operand 0, single buffered']
    #allocation3 [shape = 's32[1]{0}', space=sflag, size = 0x4, scoped, tag = 'scoped memory for tpu_custom_call.1']
    #allocation4 [shape = 's32[1]{0}', space=sflag, size = 0x4, scoped, tag = 'scoped memory for tpu_custom_call.1']
    #allocation5 [shape = 'u8[16384]{0}', space=vmem, size = 0x4000, scoped, tag = 'input window, operand 1, single buffered']
    #allocation6 [shape = 's32[1]{0}', space=sflag, size = 0x4, scoped, tag = 'scoped memory for tpu_custom_call.1']
    #allocation7 [shape = 'u8[8192]{0}', space=vmem, size = 0x2000, scoped, tag = 'input window, operand 3, single buffered']
    #allocation8 [shape = 'u8[16384]{0}', space=vmem, size = 0x4000, scoped, tag = 'output window, operand 0, single buffered']
    %9 = vsyncpa [#allocation3], 0
    %10 = vsyncpa [#allocation6], 0
    %11 = vsyncpa [#allocation4], 0
    // Predicated region
    $region2: #{tpu_custom_call.1} parent=1 // pred_check
      _
    $region3: #{tpu_custom_call.1} parent=1 // pred_check_branch
      %13 = sbr.rel (0) target = $region5
    $region4: #{tpu_custom_call.1} parent=1 // pred_region
      %s15 = ssub.s32 256, 256
      %16 = vsyncadd [#allocation3], %s15
      %s17 = sshll.u32 [#allocation2], 4
      %s18 = int_to_ptr.vmem [resolvable:$true] %s17
      %23 = dma.hbm_to_vmem [thread:$0]  %s0, 256, %s18, [#allocation3], 128, 128, 8
    $region5: #{tpu_custom_call.1} parent=1 // pred_fallthru
      _
    // Predicated region
    $region6: #{tpu_custom_call.1} parent=1 // pred_check
      _
    $region7: #{tpu_custom_call.1} parent=1 // pred_check_branch
      %25 = sbr.rel (0) target = $region9
    $region8: #{tpu_custom_call.1} parent=1 // pred_region
      %s27 = ssub.s32 512, 512
      %28 = vsyncadd [#allocation6], %s27
      %s29 = sshll.u32 [#allocation5], 4
      %s30 = int_to_ptr.vmem [resolvable:$true] %s29
      %35 = dma.hbm_to_vmem [thread:$0]  %s1, 512, %s30, [#allocation6], 128, 128, 8
    $region9: #{tpu_custom_call.1} parent=1 // pred_fallthru
      _
    // Predicated region
    $region10: #{tpu_custom_call.1} parent=1 // pred_check
      _
    $region11: #{tpu_custom_call.1} parent=1 // pred_check_branch
      %37 = sbr.rel (0) target = $region13
    $region12: #{tpu_custom_call.1} parent=1 // pred_region
      _
    $region13: #{tpu_custom_call.1} parent=1 // pred_fallthru
      _
    // Predicated region
    $region14: #{tpu_custom_call.1} parent=1 // pred_check
      _
    $region15: #{tpu_custom_call.1} parent=1 // pred_check_branch
      %39 = sbr.rel (0) target = $region17
    $region16: #{tpu_custom_call.1} parent=1 // pred_region
      %s41 = ssub.s32 256, 256
      %42 = vsyncadd [#allocation6], %s41
      %s43 = sshll.u32 [#allocation7], 4
      %s44 = int_to_ptr.vmem [resolvable:$true] %s43
      %49 = dma.hbm_to_vmem [thread:$0]  %s3, 256, %s44, [#allocation6], 128, 128, 8
    $region17: #{tpu_custom_call.1} parent=1 // pred_fallthru
      _
    // Predicated region
    $region18: #{tpu_custom_call.1} parent=1 // pred_check
      _
    $region19: #{tpu_custom_call.1} parent=1 // pred_check_branch
      %51 = sbr.rel (0) target = $region21
    $region20: #{tpu_custom_call.1} parent=1 // pred_region
      %52 = dma.done [#allocation3], 256
    $region21: #{tpu_custom_call.1} parent=1 // pred_fallthru
      _
    // Predicated region
    $region22: #{tpu_custom_call.1} parent=1 // pred_check
      _
    $region23: #{tpu_custom_call.1} parent=1 // pred_check_branch
      %54 = sbr.rel (0) target = $region25
    $region24: #{tpu_custom_call.1} parent=1 // pred_region
      %55 = dma.done [#allocation6], 512
    $region25: #{tpu_custom_call.1} parent=1 // pred_fallthru
      _
    // Predicated region
    $region26: #{tpu_custom_call.1} parent=1 // pred_check
      _
    $region27: #{tpu_custom_call.1} parent=1 // pred_check_branch
      %57 = sbr.rel (0) target = $region29
    $region28: #{tpu_custom_call.1} parent=1 // pred_region
      %58 = dma.done [#allocation6], 256
    $region29: #{tpu_custom_call.1} parent=1 // pred_fallthru
      _
    %v59 = vld [vmem:[#allocation2] sm:$0xff]
    %v60 = vld [vmem:[#allocation2 + $0x8] sm:$0xff]
    %v61 = vld [vmem:[#allocation5] sm:$0xff]
    %v62 = vld [vmem:[#allocation5 + $0x8] sm:$0xff]
    %v63 = vld [vmem:[#allocation5 + $0x10] sm:$0xff]
    %v64 = vld [vmem:[#allocation5 + $0x18] sm:$0xff]
    %v65 = vld [vmem:[%s2] sm:$0x1]
    %v67 = vlaneseq
    %v68 = vshrl.u32 %v67, 7
    %v69 = vsub.s32 0, %v68
    %v70 = vrot.slane %v65, %v69
    %vm72 = vcmask 261120
    %v74 = vsel %vm72, %v59, 0
    %v77 = vsel %vm72, %v60, 0
    %79 = vmatprep.subr.mxu0 0.0
    %80 = vmatpush1.msra.mxu0 %v61
    %81 = vmatprep.subr.mxu0 0.0
    %82 = vmatpush1.msra.mxu0 %v62
    %83 = vmatprep.subr.mxu0 0.0
    %84 = vmatpush1.msra.mxu0 %v63
    %85 = vmatprep.subr.mxu0 0.0
    %86 = vmatpush1.msra.mxu0 %v64
    %87 = vmatprep.subr.mxu0 0.0
    %88 = vmatpush1.msra.mxu0 0.0
    %89 = vmatprep.subr.mxu0 0.0
    %90 = vmatpush1.msra.mxu0 0.0
    %91 = vmatprep.subr.mxu0 0.0
    %92 = vmatpush1.msra.mxu0 0.0
    %93 = vmatprep.subr.mxu0 0.0
    %94 = vmatpush1.msra.mxu0 0.0
    %95 = vmatprep.subr.mxu0 0.0
    %96 = vmatpush1.msra.mxu0 0.0
    %97 = vmatprep.subr.mxu0 0.0
    %98 = vmatpush1.msra.mxu0 0.0
    %99 = vmatprep.subr.mxu0 0.0
    %100 = vmatpush1.msra.mxu0 0.0
    %101 = vmatprep.subr.mxu0 0.0
    %102 = vmatpush1.msra.mxu0 0.0
    %103 = vmatprep.subr.mxu0 0.0
    %104 = vmatpush1.msra.mxu0 0.0
    %105 = vmatprep.subr.mxu0 0.0
    %106 = vmatpush1.msra.mxu0 0.0
    %107 = vmatprep.subr.mxu0 0.0
    %108 = vmatpush1.msra.mxu0 0.0
    %109 = vmatprep.subr.mxu0 0.0
    %110 = vmatpush1.msra.mxu0 0.0
    %111 = vmatprep.subr.mxu0 0.0
    %112 = vmatpush1.msra.mxu0 0.0
    %113 = vmatprep.subr.mxu0 0.0
    %114 = vmatpush1.msra.mxu0 0.0
    %115 = vmatprep.subr.mxu0 0.0
    %116 = vmatpush1.msra.mxu0 0.0
    %117 = vmatprep.subr.mxu0 0.0
    %118 = vmatpush1.msra.mxu0 0.0
    %119 = vmatprep.subr.mxu0 0.0
    %120 = vmatpush1.msra.mxu0 0.0
    %121 = vmatprep.subr.mxu0 0.0
    %122 = vmatpush1.msra.mxu0 0.0
    %123 = vmatprep.subr.mxu0 0.0
    %124 = vmatpush1.msra.mxu0 0.0
    %125 = vmatprep.subr.mxu0 0.0
    %126 = vmatpush1.msra.mxu0 0.0
    %127 = vmatprep.subr.mxu0 0.0
    %128 = vmatpush1.msra.mxu0 0.0
    %129 = vmatprep.subr.mxu0 0.0
    %130 = vmatpush1.msra.mxu0 0.0
    %131 = vmatprep.subr.mxu0 0.0
    %132 = vmatpush1.msra.mxu0 0.0
    %133 = vmatprep.subr.mxu0 0.0
    %134 = vmatpush1.msra.mxu0 0.0
    %135 = vmatprep.subr.mxu0 0.0
    %136 = vmatpush1.msra.mxu0 0.0
    %137 = vmatprep.subr.mxu0 0.0
    %138 = vmatpush1.msra.mxu0 0.0
    %139 = vmatprep.subr.mxu0 0.0
    %140 = vmatpush1.msra.mxu0 0.0
    %141 = vmatprep.subr.mxu0 0.0
    %142 = vmatpush1.msra.mxu0 0.0
    %143 = vmatprep.mubr.f32.mxu0 0.0
    %144 = vmatmul.mubr.f32.gmra.mrb[0].mxu0 %v74
    %v145 = vpop.f32.mrb[0].mxu0
    %v146 = vadd.f32 %v70, %v145
    %v147 = vpop.f32.mrb[0].mxu0
    %148 = vmatprep.mubr.f32.mxu0 0.0
    %149 = vmatmul.mubr.f32.gmra.mrb[0].mxu0 %v77
    %v150 = vpop.f32.mrb[0].mxu0
    %v151 = vadd.f32 %v70, %v150
    %v152 = vpop.f32.mrb[0].mxu0
    %153 = vdwg.mxu0
    %154 = vst [vmem:[#allocation8] sm:$0xff] %v146
    %155 = vst [vmem:[#allocation8 + $0x10] sm:$0xff] %v151
    %v156 = vmul.f32 %v146, 0.5
    %v157 = vmul.f32 %v151, 0.5
    %v158 = vmul.f32 %v156, 1.442695
    %v159 = vpow.pop %v158
    %v160 = vmul.f32 %v157, 1.442695
    %v161 = vpow.pop %v160
    %v162 = vld [vmem:[#allocation7] sm:$0xff]
    %v163 = vld [vmem:[#allocation7 + $0x8] sm:$0xff]
    %166 = vrot.lane.b32.xlu0 %v162, 64
    %v167 = vpop.permute.xlu0 %166
    %168 = vrot.lane.b32.xlu0 %v163, 64
    %v169 = vpop.permute.xlu0 %168
    %v172 = vmul.f32 %v159, %v167
    %v173 = vmul.f32 %v161, %v169
    %176 = vrot.lane.b32.xlu0 %v172, 64
    %v177 = vpop.permute.xlu0 %176
    %178 = vrot.lane.b32.xlu0 %v173, 64
    %v179 = vpop.permute.xlu0 %178
    %v182 = vadd.f32 %v146, %v177
    %v183 = vadd.f32 %v151, %v179
    %vm184 = vcmask 523264
    %185 = vst.msk [vmem:[#allocation8 + $0x8] sm:$0xff] %vm184, %v182
    %186 = vst.msk [vmem:[#allocation8 + $0x18] sm:$0xff] %vm184, %v183
    // Predicated region
    $region30: #{tpu_custom_call.1} parent=1 // pred_check
      _
    $region31: #{tpu_custom_call.1} parent=1 // pred_check_branch
      %188 = sbr.rel (0) target = $region33
    $region32: #{tpu_custom_call.1} parent=1 // pred_region
      %s190 = ssub.s32 512, 512
      %191 = vsyncadd [#allocation4], %s190
      %s192 = sshll.u32 [#allocation8], 4
      %s193 = int_to_ptr.vmem [resolvable:$true] %s192
      %198 = dma.vmem_to_hbm [thread:$0]  %s193, 512, %s4, [#allocation4], 256, 256, 16
    $region33: #{tpu_custom_call.1} parent=1 // pred_fallthru
      _
    // Predicated region
    $region34: #{tpu_custom_call.1} parent=1 // pred_check
      _
    $region35: #{tpu_custom_call.1} parent=1 // pred_check_branch
      %200 = sbr.rel (0) target = $region37
    $region36: #{tpu_custom_call.1} parent=1 // pred_region
      %201 = dma.done [#allocation4], 512
    $region37: #{tpu_custom_call.1} parent=1 // pred_fallthru
      _
    %202 = vsyncpa [#allocation3], 1
    %203 = vsyncpa [#allocation6], 1
    %204 = vsyncpa [#allocation4], 1

</llo_original>
